<compile_context>
chip_gen: v7x
topology: tpu7x:2x2x1
jax: 0.10.0
libtpu: 0.0.40
codegen_flags: <defaults>
</compile_context>

<pallas_src>
import jax
import jax.numpy as jnp
from jax import lax
from jax.experimental import pallas as pl
from jax.experimental.pallas import tpu as pltpu
import numpy as np

PADDING_IDX = 1          # RoBERTa padding idx (for position ids)
LN_EPS = 1e-12


def _roberta_emb_kernel(ids_sref,                 # SMEM: (B*S,) clipped token ids
                        posid_ref, ttid_ref,      # VMEM: (B*NC, CHUNK) int32
                        pt_ref,                   # VMEM: (P+T, H) f32, pos||type table
                        gamma_ref, beta_ref,      # VMEM: (1, H) f32
                        word_hbm,                 # HBM:  (V, H), native dtype
                        out_ref,                  # VMEM out: (1, S, H)
                        wstage, sem):             # scratch: (2, CHUNK, H), DMA sem (2,)
    b = pl.program_id(0)
    S, H = out_ref.shape[1], out_ref.shape[2]
    CHUNK = wstage.shape[1]
    NC = S // CHUNK
    PT = pt_ref.shape[0]

    def issue_chunk(c, slot):
        """Start the CHUNK word-row DMAs of chunk c into staging slot `slot`."""
        base = b * S + c * CHUNK

        def row(r, carry):
            tok = ids_sref[base + r]
            pltpu.make_async_copy(word_hbm.at[tok], wstage.at[slot, r],
                                  sem.at[slot]).start()
            return carry

        # No serial carry (position ids come precomputed), so a partially
        # unrolled loop lets descriptor setup / SMEM reads co-issue.
        lax.fori_loop(0, CHUNK, row, 0, unroll=min(CHUNK, 8))

    # Prologue: start chunk 0 into slot 0.
    issue_chunk(0, 0)

    def chunk_body(c, carry):
        slot = c % 2

        # Prefetch the next chunk's word rows into the other slot while we
        # wait on / compute this chunk.
        @pl.when(c + 1 < NC)
        def _():
            issue_chunk(c + 1, 1 - slot)

        # One aggregate wait per chunk: all CHUNK row copies signalled
        # sem[slot]; the wait descriptor only needs the matching total byte
        # count (CHUNK rows of H) and the semaphore.
        pltpu.make_async_copy(word_hbm.at[pl.ds(0, CHUNK)], wstage.at[slot],
                              sem.at[slot]).wait()

        # --- gather pos + token-type rows with a one-hot MXU matmul ---
        # Indices for this chunk arrive as a (1, CHUNK) lane-major row; turn
        # them into a (CHUNK, 1) column with a diagonal select + lane
        # reduction (no transpose/relayout needed).
        ridx = b * NC + c
        pid_row = posid_ref[pl.ds(ridx, 1), :]            # (1, CHUNK) int32
        tid_row = ttid_ref[pl.ds(ridx, 1), :]             # (1, CHUNK) int32, offset by P

        sub_i = lax.broadcasted_iota(jnp.int32, (CHUNK, CHUNK), 0)
        lane_i = lax.broadcasted_iota(jnp.int32, (CHUNK, CHUNK), 1)
        diag = sub_i == lane_i
        pid_col = jnp.sum(jnp.where(diag, pid_row, 0), axis=1, keepdims=True)
        tid_col = jnp.sum(jnp.where(diag, tid_row, 0), axis=1, keepdims=True)

        col_iota = lax.broadcasted_iota(jnp.int32, (CHUNK, PT), 1)
        onehot = ((col_iota == pid_col) | (col_iota == tid_col)).astype(jnp.float32)
        pt_rows = jnp.dot(onehot, pt_ref[...],
                          preferred_element_type=jnp.float32)       # (CHUNK, H)

        # --- sum embeddings + BertLayerNorm (TF style: eps inside sqrt) ---
        x = wstage[slot].astype(jnp.float32) + pt_rows               # (CHUNK, H) f32
        u = jnp.mean(x, axis=-1, keepdims=True)
        xc = x - u
        var = jnp.mean(xc * xc, axis=-1, keepdims=True)
        inv = lax.rsqrt(var + LN_EPS)                                # EUP slot
        y = xc * inv * gamma_ref[...] + beta_ref[...]

        off = pl.multiple_of(c * CHUNK, CHUNK)
        out_ref[0, pl.ds(off, CHUNK), :] = y.astype(out_ref.dtype)
        return carry

    lax.fori_loop(0, NC, chunk_body, 0)


def _pick_chunk(S):
    for c in (256, 128, 64, 32, 16, 8):
        if S % c == 0:
            return c
    return S  # small / odd sequence length -> single chunk


def roberta_embeddings(input_ids, word_emb, pos_emb, type_emb, gamma, beta,
                       token_type_ids=None, out_dtype=None, chunk=None):
    B, S = input_ids.shape
    V, H = word_emb.shape
    P = pos_emb.shape[0]
    T = type_emb.shape[0]
    if out_dtype is None:
        out_dtype = word_emb.dtype
    if token_type_ids is None:
        token_type_ids = jnp.zeros_like(input_ids)

    CHUNK = _pick_chunk(S) if chunk is None else int(chunk)
    assert S % CHUNK == 0, "sequence length must be divisible by the chunk size"
    assert V >= CHUNK, "vocab smaller than chunk size"
    NC = S // CHUNK

    ids = input_ids.astype(jnp.int32)
    tt = token_type_ids.astype(jnp.int32)

    # RoBERTa position ids computed here (cheap XLA cumsum) so the in-kernel
    # DMA-issue loop carries no serial scalar prefix sum.
    mask = (ids != PADDING_IDX).astype(jnp.int32)
    position_ids = jnp.cumsum(mask, axis=1) * mask + PADDING_IDX

    # OOB-safe indices (the module assumes valid ids / positions that fit).
    ids_flat = jnp.clip(ids, 0, V - 1).reshape(B * S)
    posid = jnp.clip(position_ids, 0, P - 1).reshape(B * NC, CHUNK)
    ttid_off = (jnp.clip(tt, 0, T - 1) + P).reshape(B * NC, CHUNK)

    # Concatenated small table (pos rows first, then token-type rows).
    pt_table = jnp.concatenate(
        [pos_emb.astype(jnp.float32), type_emb.astype(jnp.float32)], axis=0)
    gamma2 = gamma.reshape(1, H).astype(jnp.float32)
    beta2 = beta.reshape(1, H).astype(jnp.float32)

    const = lambda shape: pl.BlockSpec(shape, lambda b, ids_ref: (0,) * len(shape))

    grid_spec = pltpu.PrefetchScalarGridSpec(
        num_scalar_prefetch=1,                # token ids -> SMEM (drive row DMAs)
        grid=(B,),                            # one sequence per grid step
        in_specs=[
            const((B * NC, CHUNK)),           # position ids (int32, VMEM)
            const((B * NC, CHUNK)),           # token-type ids + P offset
            const((P + T, H)),                # pos || type table (f32, VMEM)
            const((1, H)),                    # LayerNorm weight
            const((1, H)),                    # LayerNorm bias
            pl.BlockSpec(memory_space=pl.ANY),    # word table stays in HBM
        ],
        out_specs=pl.BlockSpec((1, S, H), lambda b, ids_ref: (b, 0, 0)),
        scratch_shapes=[
            pltpu.VMEM((2, CHUNK, H), word_emb.dtype),   # double-buffered word rows
            pltpu.SemaphoreType.DMA((2,)),               # one DMA sem per slot
        ],
    )

    # Explicit VMEM budget (key on v7x's 64 MiB).
    out_isz = jnp.dtype(out_dtype).itemsize
    w_isz = jnp.dtype(word_emb.dtype).itemsize
    vmem_bytes = (2 * S * H * out_isz                 # double-buffered output block
                  + 2 * CHUNK * H * w_isz             # word staging
                  + 2 * (P + T + 2) * H * 4           # small tables + LN params
                  + 4 * B * S * 4                     # index arrays
                  + 6 * CHUNK * H * 4                 # epilogue temporaries
                  + (P + T + CHUNK) * CHUNK * 4)      # one-hot / diag temporaries
    vmem_limit = min(max(int(1.5 * vmem_bytes) + (1 << 20), 32 << 20), 100 << 20)

    return pl.pallas_call(
        _roberta_emb_kernel,
        out_shape=jax.ShapeDtypeStruct((B, S, H), out_dtype),
        grid_spec=grid_spec,
        compiler_params=pltpu.CompilerParams(
            dimension_semantics=("parallel",),
            vmem_limit_bytes=vmem_limit),
    )(ids_flat, posid, ttid_off, pt_table, gamma2, beta2, word_emb)


def reference(input_ids, word_emb, pos_emb, type_emb, gamma, beta,
              token_type_ids=None):
    if token_type_ids is None:
        token_type_ids = jnp.zeros_like(input_ids)
    mask = (input_ids != PADDING_IDX).astype(jnp.int32)
    position_ids = jnp.cumsum(mask, axis=1) * mask + PADDING_IDX
    x = (word_emb[input_ids] + pos_emb[position_ids]
         + type_emb[token_type_ids])
    u = x.mean(-1, keepdims=True)
    s = ((x - u) ** 2).mean(-1, keepdims=True)
    xn = (x - u) / jnp.sqrt(s + LN_EPS)
    return gamma * xn + beta


if __name__ == "__main__":
    # Small config consistent with the module.
    VOCAB, HIDDEN = 64, 128
    MAX_POS, TYPE_VOCAB = 64, 2

    key = jax.random.PRNGKey(0)
    k_w, k_p, k_t, k_ids, k_ids2, k_tt2 = jax.random.split(key, 6)

    # Keep the small tables exactly bf16-representable so the MXU one-hot
    # gather matches the f32 reference bit-for-bit regardless of MXU pass mode.
    def bf16_exact(x):
        return x.astype(jnp.bfloat16).astype(jnp.float32)

    word_emb = 0.02 * jax.random.normal(k_w, (VOCAB, HIDDEN), jnp.float32)
    word_emb = word_emb.at[0].set(0.0)  # nn.Embedding padding_idx=0 -> zero row
    pos_emb = bf16_exact(0.02 * jax.random.normal(k_p, (MAX_POS, HIDDEN), jnp.float32))
    type_emb = bf16_exact(0.02 * jax.random.normal(k_t, (TYPE_VOCAB, HIDDEN), jnp.float32))
    gamma = jnp.ones((HIDDEN,), jnp.float32)
    beta = jnp.zeros((HIDDEN,), jnp.float32)

    # --- test 1: single chunk, default token types, trailing padding ---
    B, S = 2, 8
    input_ids = jax.random.randint(k_ids, (B, S), 2, VOCAB, jnp.int32)
    input_ids = input_ids.at[0, -2:].set(PADDING_IDX)

    out = roberta_embeddings(input_ids, word_emb, pos_emb, type_emb, gamma, beta)
    out = jax.block_until_ready(out)
    ref = reference(input_ids, word_emb, pos_emb, type_emb, gamma, beta)
    np.testing.assert_allclose(np.asarray(out), np.asarray(ref),
                               rtol=1e-5, atol=1e-5)

    # --- test 2: multi-chunk (exercises double-buffered gather + prefetch),
    #             explicit token types, interior padding ---
    B2, S2 = 2, 32
    ids2 = jax.random.randint(k_ids2, (B2, S2), 2, VOCAB, jnp.int32)
    ids2 = ids2.at[0, -5:].set(PADDING_IDX)
    ids2 = ids2.at[1, 3].set(PADDING_IDX)
    tt2 = jax.random.randint(k_tt2, (B2, S2), 0, TYPE_VOCAB, jnp.int32)

    out2 = roberta_embeddings(ids2, word_emb, pos_emb, type_emb, gamma, beta,
                              token_type_ids=tt2, chunk=8)
    out2 = jax.block_until_ready(out2)
    ref2 = reference(ids2, word_emb, pos_emb, type_emb, gamma, beta,
                     token_type_ids=tt2)
    np.testing.assert_allclose(np.asarray(out2), np.asarray(ref2),
                               rtol=1e-5, atol=1e-5)

    print("KERNEL_OK")
</pallas_src>

<mosaic_0001>
module attributes {stable_mosaic.version = 11 : i64} {
  func.func @_roberta_emb_kernel(%arg0: i32, %arg1: memref<16xi32, #tpu.memory_space<smem>>, %arg2: memref<2x8xi32, #tpu.memory_space<vmem>>, %arg3: memref<2x8xi32, #tpu.memory_space<vmem>>, %arg4: memref<66x128xf32, #tpu.memory_space<vmem>>, %arg5: memref<1x128xf32, #tpu.memory_space<vmem>>, %arg6: memref<1x128xf32, #tpu.memory_space<vmem>>, %arg7: memref<64x128xf32, #tpu.memory_space<any>>, %arg8: memref<1x8x128xf32, #tpu.memory_space<vmem>>, %arg9: memref<2x8x128xf32, #tpu.memory_space<vmem>>, %arg10: memref<2x!tpu.dma_semaphore, #tpu.memory_space<semaphore_mem>>) attributes {dimension_semantics = [#tpu.dimension_semantics<parallel>], iteration_bounds = array<i64: 2>, scalar_prefetch = 1 : i64, scratch_operands = 2 : i64, tpu.core_type = #tpu.core_type<tc>, window_params = [{pipeline_mode = #tpu.pipeline_mode<synchronous>, transform_indices = @transform_0, window_bounds = array<i64: 2, 8>}, {pipeline_mode = #tpu.pipeline_mode<synchronous>, transform_indices = @transform_1, window_bounds = array<i64: 2, 8>}, {pipeline_mode = #tpu.pipeline_mode<synchronous>, transform_indices = @transform_2, window_bounds = array<i64: 66, 128>}, {pipeline_mode = #tpu.pipeline_mode<synchronous>, transform_indices = @transform_3, window_bounds = array<i64: 1, 128>}, {pipeline_mode = #tpu.pipeline_mode<synchronous>, transform_indices = @transform_4, window_bounds = array<i64: 1, 128>}, {}, {transform_indices = @transform_6, window_bounds = array<i64: 1, 8, 128>}]} {
    %c8_i32 = arith.constant 8 : i32
    %0 = arith.muli %arg0, %c8_i32 : i32
    %c0_i32 = arith.constant 0 : i32
    %1 = arith.addi %0, %c0_i32 : i32
    %c0_i32_0 = arith.constant 0 : i32
    %2 = arith.addi %1, %c0_i32_0 : i32
    %3 = arith.index_cast %2 : i32 to index
    %4 = memref.load %arg1[%3] : memref<16xi32, #tpu.memory_space<smem>>
    %c0_i32_1 = arith.constant 0 : i32
    %c0_i32_2 = arith.constant 0 : i32
    %c0_i32_3 = arith.constant 0 : i32
    %5 = tpu.memref_slice %arg7[%4, %c0_i32_3] : memref<64x128xf32, #tpu.memory_space<any>> -> memref<1x128xf32, #tpu.memory_space<any>>
    %6 = tpu.memref_squeeze %5 : memref<1x128xf32, #tpu.memory_space<any>> -> memref<128xf32, #tpu.memory_space<any>>
    %c0_i32_4 = arith.constant 0 : i32
    %7 = tpu.memref_slice %arg9[%c0_i32_1, %c0_i32_0, %c0_i32_4] : memref<2x8x128xf32, #tpu.memory_space<vmem>> -> memref<1x1x128xf32, #tpu.memory_space<vmem>>
    %8 = tpu.memref_squeeze %7 : memref<1x1x128xf32, #tpu.memory_space<vmem>> -> memref<128xf32, #tpu.memory_space<vmem>>
    %9 = tpu.memref_slice %arg10[%c0_i32_2] : memref<2x!tpu.dma_semaphore, #tpu.memory_space<semaphore_mem>> -> memref<1x!tpu.dma_semaphore, #tpu.memory_space<semaphore_mem>>
    %10 = tpu.memref_squeeze %9 : memref<1x!tpu.dma_semaphore, #tpu.memory_space<semaphore_mem>> -> memref<!tpu.dma_semaphore, #tpu.memory_space<semaphore_mem>>
    tpu.enqueue_dma source(%6 : memref<128xf32, #tpu.memory_space<any>>) target(%8 : memref<128xf32, #tpu.memory_space<vmem>>) target_semaphore(%10 : memref<!tpu.dma_semaphore, #tpu.memory_space<semaphore_mem>>)
    %c1_i32 = arith.constant 1 : i32
    %11 = arith.addi %1, %c1_i32 : i32
    %12 = arith.index_cast %11 : i32 to index
    %13 = memref.load %arg1[%12] : memref<16xi32, #tpu.memory_space<smem>>
    %c0_i32_5 = arith.constant 0 : i32
    %c0_i32_6 = arith.constant 0 : i32
    %c0_i32_7 = arith.constant 0 : i32
    %14 = tpu.memref_slice %arg7[%13, %c0_i32_7] : memref<64x128xf32, #tpu.memory_space<any>> -> memref<1x128xf32, #tpu.memory_space<any>>
    %15 = tpu.memref_squeeze %14 : memref<1x128xf32, #tpu.memory_space<any>> -> memref<128xf32, #tpu.memory_space<any>>
    %c0_i32_8 = arith.constant 0 : i32
    %16 = tpu.memref_slice %arg9[%c0_i32_5, %c1_i32, %c0_i32_8] : memref<2x8x128xf32, #tpu.memory_space<vmem>> -> memref<1x1x128xf32, #tpu.memory_space<vmem>>
    %17 = tpu.memref_squeeze %16 : memref<1x1x128xf32, #tpu.memory_space<vmem>> -> memref<128xf32, #tpu.memory_space<vmem>>
    %18 = tpu.memref_slice %arg10[%c0_i32_6] : memref<2x!tpu.dma_semaphore, #tpu.memory_space<semaphore_mem>> -> memref<1x!tpu.dma_semaphore, #tpu.memory_space<semaphore_mem>>
    %19 = tpu.memref_squeeze %18 : memref<1x!tpu.dma_semaphore, #tpu.memory_space<semaphore_mem>> -> memref<!tpu.dma_semaphore, #tpu.memory_space<semaphore_mem>>
    tpu.enqueue_dma source(%15 : memref<128xf32, #tpu.memory_space<any>>) target(%17 : memref<128xf32, #tpu.memory_space<vmem>>) target_semaphore(%19 : memref<!tpu.dma_semaphore, #tpu.memory_space<semaphore_mem>>)
    %c2_i32 = arith.constant 2 : i32
    %20 = arith.addi %1, %c2_i32 : i32
    %21 = arith.index_cast %20 : i32 to index
    %22 = memref.load %arg1[%21] : memref<16xi32, #tpu.memory_space<smem>>
    %c0_i32_9 = arith.constant 0 : i32
    %c0_i32_10 = arith.constant 0 : i32
    %c0_i32_11 = arith.constant 0 : i32
    %23 = tpu.memref_slice %arg7[%22, %c0_i32_11] : memref<64x128xf32, #tpu.memory_space<any>> -> memref<1x128xf32, #tpu.memory_space<any>>
    %24 = tpu.memref_squeeze %23 : memref<1x128xf32, #tpu.memory_space<any>> -> memref<128xf32, #tpu.memory_space<any>>
    %c0_i32_12 = arith.constant 0 : i32
    %25 = tpu.memref_slice %arg9[%c0_i32_9, %c2_i32, %c0_i32_12] : memref<2x8x128xf32, #tpu.memory_space<vmem>> -> memref<1x1x128xf32, #tpu.memory_space<vmem>>
    %26 = tpu.memref_squeeze %25 : memref<1x1x128xf32, #tpu.memory_space<vmem>> -> memref<128xf32, #tpu.memory_space<vmem>>
    %27 = tpu.memref_slice %arg10[%c0_i32_10] : memref<2x!tpu.dma_semaphore, #tpu.memory_space<semaphore_mem>> -> memref<1x!tpu.dma_semaphore, #tpu.memory_space<semaphore_mem>>
    %28 = tpu.memref_squeeze %27 : memref<1x!tpu.dma_semaphore, #tpu.memory_space<semaphore_mem>> -> memref<!tpu.dma_semaphore, #tpu.memory_space<semaphore_mem>>
    tpu.enqueue_dma source(%24 : memref<128xf32, #tpu.memory_space<any>>) target(%26 : memref<128xf32, #tpu.memory_space<vmem>>) target_semaphore(%28 : memref<!tpu.dma_semaphore, #tpu.memory_space<semaphore_mem>>)
    %c3_i32 = arith.constant 3 : i32
    %29 = arith.addi %1, %c3_i32 : i32
    %30 = arith.index_cast %29 : i32 to index
    %31 = memref.load %arg1[%30] : memref<16xi32, #tpu.memory_space<smem>>
    %c0_i32_13 = arith.constant 0 : i32
    %c0_i32_14 = arith.constant 0 : i32
    %c0_i32_15 = arith.constant 0 : i32
    %32 = tpu.memref_slice %arg7[%31, %c0_i32_15] : memref<64x128xf32, #tpu.memory_space<any>> -> memref<1x128xf32, #tpu.memory_space<any>>
    %33 = tpu.memref_squeeze %32 : memref<1x128xf32, #tpu.memory_space<any>> -> memref<128xf32, #tpu.memory_space<any>>
    %c0_i32_16 = arith.constant 0 : i32
    %34 = tpu.memref_slice %arg9[%c0_i32_13, %c3_i32, %c0_i32_16] : memref<2x8x128xf32, #tpu.memory_space<vmem>> -> memref<1x1x128xf32, #tpu.memory_space<vmem>>
    %35 = tpu.memref_squeeze %34 : memref<1x1x128xf32, #tpu.memory_space<vmem>> -> memref<128xf32, #tpu.memory_space<vmem>>
    %36 = tpu.memref_slice %arg10[%c0_i32_14] : memref<2x!tpu.dma_semaphore, #tpu.memory_space<semaphore_mem>> -> memref<1x!tpu.dma_semaphore, #tpu.memory_space<semaphore_mem>>
    %37 = tpu.memref_squeeze %36 : memref<1x!tpu.dma_semaphore, #tpu.memory_space<semaphore_mem>> -> memref<!tpu.dma_semaphore, #tpu.memory_space<semaphore_mem>>
    tpu.enqueue_dma source(%33 : memref<128xf32, #tpu.memory_space<any>>) target(%35 : memref<128xf32, #tpu.memory_space<vmem>>) target_semaphore(%37 : memref<!tpu.dma_semaphore, #tpu.memory_space<semaphore_mem>>)
    %c4_i32 = arith.constant 4 : i32
    %38 = arith.addi %1, %c4_i32 : i32
    %39 = arith.index_cast %38 : i32 to index
    %40 = memref.load %arg1[%39] : memref<16xi32, #tpu.memory_space<smem>>
    %c0_i32_17 = arith.constant 0 : i32
    %c0_i32_18 = arith.constant 0 : i32
    %c0_i32_19 = arith.constant 0 : i32
    %41 = tpu.memref_slice %arg7[%40, %c0_i32_19] : memref<64x128xf32, #tpu.memory_space<any>> -> memref<1x128xf32, #tpu.memory_space<any>>
    %42 = tpu.memref_squeeze %41 : memref<1x128xf32, #tpu.memory_space<any>> -> memref<128xf32, #tpu.memory_space<any>>
    %c0_i32_20 = arith.constant 0 : i32
    %43 = tpu.memref_slice %arg9[%c0_i32_17, %c4_i32, %c0_i32_20] : memref<2x8x128xf32, #tpu.memory_space<vmem>> -> memref<1x1x128xf32, #tpu.memory_space<vmem>>
    %44 = tpu.memref_squeeze %43 : memref<1x1x128xf32, #tpu.memory_space<vmem>> -> memref<128xf32, #tpu.memory_space<vmem>>
    %45 = tpu.memref_slice %arg10[%c0_i32_18] : memref<2x!tpu.dma_semaphore, #tpu.memory_space<semaphore_mem>> -> memref<1x!tpu.dma_semaphore, #tpu.memory_space<semaphore_mem>>
    %46 = tpu.memref_squeeze %45 : memref<1x!tpu.dma_semaphore, #tpu.memory_space<semaphore_mem>> -> memref<!tpu.dma_semaphore, #tpu.memory_space<semaphore_mem>>
    tpu.enqueue_dma source(%42 : memref<128xf32, #tpu.memory_space<any>>) target(%44 : memref<128xf32, #tpu.memory_space<vmem>>) target_semaphore(%46 : memref<!tpu.dma_semaphore, #tpu.memory_space<semaphore_mem>>)
    %c5_i32 = arith.constant 5 : i32
    %47 = arith.addi %1, %c5_i32 : i32
    %48 = arith.index_cast %47 : i32 to index
    %49 = memref.load %arg1[%48] : memref<16xi32, #tpu.memory_space<smem>>
    %c0_i32_21 = arith.constant 0 : i32
    %c0_i32_22 = arith.constant 0 : i32
    %c0_i32_23 = arith.constant 0 : i32
    %50 = tpu.memref_slice %arg7[%49, %c0_i32_23] : memref<64x128xf32, #tpu.memory_space<any>> -> memref<1x128xf32, #tpu.memory_space<any>>
    %51 = tpu.memref_squeeze %50 : memref<1x128xf32, #tpu.memory_space<any>> -> memref<128xf32, #tpu.memory_space<any>>
    %c0_i32_24 = arith.constant 0 : i32
    %52 = tpu.memref_slice %arg9[%c0_i32_21, %c5_i32, %c0_i32_24] : memref<2x8x128xf32, #tpu.memory_space<vmem>> -> memref<1x1x128xf32, #tpu.memory_space<vmem>>
    %53 = tpu.memref_squeeze %52 : memref<1x1x128xf32, #tpu.memory_space<vmem>> -> memref<128xf32, #tpu.memory_space<vmem>>
    %54 = tpu.memref_slice %arg10[%c0_i32_22] : memref<2x!tpu.dma_semaphore, #tpu.memory_space<semaphore_mem>> -> memref<1x!tpu.dma_semaphore, #tpu.memory_space<semaphore_mem>>
    %55 = tpu.memref_squeeze %54 : memref<1x!tpu.dma_semaphore, #tpu.memory_space<semaphore_mem>> -> memref<!tpu.dma_semaphore, #tpu.memory_space<semaphore_mem>>
    tpu.enqueue_dma source(%51 : memref<128xf32, #tpu.memory_space<any>>) target(%53 : memref<128xf32, #tpu.memory_space<vmem>>) target_semaphore(%55 : memref<!tpu.dma_semaphore, #tpu.memory_space<semaphore_mem>>)
    %c6_i32 = arith.constant 6 : i32
    %56 = arith.addi %1, %c6_i32 : i32
    %57 = arith.index_cast %56 : i32 to index
    %58 = memref.load %arg1[%57] : memref<16xi32, #tpu.memory_space<smem>>
    %c0_i32_25 = arith.constant 0 : i32
    %c0_i32_26 = arith.constant 0 : i32
    %c0_i32_27 = arith.constant 0 : i32
    %59 = tpu.memref_slice %arg7[%58, %c0_i32_27] : memref<64x128xf32, #tpu.memory_space<any>> -> memref<1x128xf32, #tpu.memory_space<any>>
    %60 = tpu.memref_squeeze %59 : memref<1x128xf32, #tpu.memory_space<any>> -> memref<128xf32, #tpu.memory_space<any>>
    %c0_i32_28 = arith.constant 0 : i32
    %61 = tpu.memref_slice %arg9[%c0_i32_25, %c6_i32, %c0_i32_28] : memref<2x8x128xf32, #tpu.memory_space<vmem>> -> memref<1x1x128xf32, #tpu.memory_space<vmem>>
    %62 = tpu.memref_squeeze %61 : memref<1x1x128xf32, #tpu.memory_space<vmem>> -> memref<128xf32, #tpu.memory_space<vmem>>
    %63 = tpu.memref_slice %arg10[%c0_i32_26] : memref<2x!tpu.dma_semaphore, #tpu.memory_space<semaphore_mem>> -> memref<1x!tpu.dma_semaphore, #tpu.memory_space<semaphore_mem>>
    %64 = tpu.memref_squeeze %63 : memref<1x!tpu.dma_semaphore, #tpu.memory_space<semaphore_mem>> -> memref<!tpu.dma_semaphore, #tpu.memory_space<semaphore_mem>>
    tpu.enqueue_dma source(%60 : memref<128xf32, #tpu.memory_space<any>>) target(%62 : memref<128xf32, #tpu.memory_space<vmem>>) target_semaphore(%64 : memref<!tpu.dma_semaphore, #tpu.memory_space<semaphore_mem>>)
    %c7_i32 = arith.constant 7 : i32
    %65 = arith.addi %1, %c7_i32 : i32
    %66 = arith.index_cast %65 : i32 to index
    %67 = memref.load %arg1[%66] : memref<16xi32, #tpu.memory_space<smem>>
    %c0_i32_29 = arith.constant 0 : i32
    %c0_i32_30 = arith.constant 0 : i32
    %c0_i32_31 = arith.constant 0 : i32
    %68 = tpu.memref_slice %arg7[%67, %c0_i32_31] : memref<64x128xf32, #tpu.memory_space<any>> -> memref<1x128xf32, #tpu.memory_space<any>>
    %69 = tpu.memref_squeeze %68 : memref<1x128xf32, #tpu.memory_space<any>> -> memref<128xf32, #tpu.memory_space<any>>
    %c0_i32_32 = arith.constant 0 : i32
    %70 = tpu.memref_slice %arg9[%c0_i32_29, %c7_i32, %c0_i32_32] : memref<2x8x128xf32, #tpu.memory_space<vmem>> -> memref<1x1x128xf32, #tpu.memory_space<vmem>>
    %71 = tpu.memref_squeeze %70 : memref<1x1x128xf32, #tpu.memory_space<vmem>> -> memref<128xf32, #tpu.memory_space<vmem>>
    %72 = tpu.memref_slice %arg10[%c0_i32_30] : memref<2x!tpu.dma_semaphore, #tpu.memory_space<semaphore_mem>> -> memref<1x!tpu.dma_semaphore, #tpu.memory_space<semaphore_mem>>
    %73 = tpu.memref_squeeze %72 : memref<1x!tpu.dma_semaphore, #tpu.memory_space<semaphore_mem>> -> memref<!tpu.dma_semaphore, #tpu.memory_space<semaphore_mem>>
    tpu.enqueue_dma source(%69 : memref<128xf32, #tpu.memory_space<any>>) target(%71 : memref<128xf32, #tpu.memory_space<vmem>>) target_semaphore(%73 : memref<!tpu.dma_semaphore, #tpu.memory_space<semaphore_mem>>)
    %c8_i32_33 = arith.constant 8 : i32
    %c0_i32_34 = arith.constant 0 : i32
    %c2_i32_35 = arith.constant 2 : i32
    %c0_i32_36 = arith.constant 0 : i32
    %74 = arith.cmpi eq, %c2_i32_35, %c0_i32_36 : i32
    %c1_i32_37 = arith.constant 1 : i32
    %75 = arith.select %74, %c1_i32_37, %c2_i32_35 : i32
    %76 = arith.remsi %c0_i32_34, %75 : i32
    %c0_i32_38 = arith.constant 0 : i32
    %77 = arith.cmpi ne, %76, %c0_i32_38 : i32
    %c0_i32_39 = arith.constant 0 : i32
    %78 = arith.cmpi slt, %76, %c0_i32_39 : i32
    %c0_i32_40 = arith.constant 0 : i32
    %79 = arith.cmpi slt, %75, %c0_i32_40 : i32
    %80 = arith.xori %78, %79 : i1
    %81 = arith.andi %80, %77 : i1
    %82 = arith.addi %76, %75 : i32
    %83 = arith.select %81, %82, %76 : i32
    %c1_i32_41 = arith.constant 1 : i32
    %84 = arith.addi %c0_i32_34, %c1_i32_41 : i32
    %c1_i32_42 = arith.constant 1 : i32
    %85 = arith.cmpi slt, %84, %c1_i32_42 : i32
    %86 = arith.extui %85 : i1 to i32
    %c0_i32_43 = arith.constant 0 : i32
    %87 = arith.cmpi ne, %86, %c0_i32_43 : i32
    scf.if %87 {
      %c1_i32_71 = arith.constant 1 : i32
      %156 = arith.addi %c0_i32_34, %c1_i32_71 : i32
      %c1_i32_72 = arith.constant 1 : i32
      %157 = arith.subi %c1_i32_72, %83 : i32
      %c8_i32_73 = arith.constant 8 : i32
      %158 = arith.muli %arg0, %c8_i32_73 : i32
      %c8_i32_74 = arith.constant 8 : i32
      %159 = arith.muli %156, %c8_i32_74 : i32
      %160 = arith.addi %158, %159 : i32
      %c0_i32_75 = arith.constant 0 : i32
      %161 = arith.addi %160, %c0_i32_75 : i32
      %162 = arith.index_cast %161 : i32 to index
      %163 = memref.load %arg1[%162] : memref<16xi32, #tpu.memory_space<smem>>
      %c0_i32_76 = arith.constant 0 : i32
      %164 = tpu.memref_slice %arg7[%163, %c0_i32_76] : memref<64x128xf32, #tpu.memory_space<any>> -> memref<1x128xf32, #tpu.memory_space<any>>
      %165 = tpu.memref_squeeze %164 : memref<1x128xf32, #tpu.memory_space<any>> -> memref<128xf32, #tpu.memory_space<any>>
      %c0_i32_77 = arith.constant 0 : i32
      %166 = tpu.memref_slice %arg9[%157, %c0_i32_75, %c0_i32_77] : memref<2x8x128xf32, #tpu.memory_space<vmem>> -> memref<1x1x128xf32, #tpu.memory_space<vmem>>
      %167 = tpu.memref_squeeze %166 : memref<1x1x128xf32, #tpu.memory_space<vmem>> -> memref<128xf32, #tpu.memory_space<vmem>>
      %168 = tpu.memref_slice %arg10[%157] : memref<2x!tpu.dma_semaphore, #tpu.memory_space<semaphore_mem>> -> memref<1x!tpu.dma_semaphore, #tpu.memory_space<semaphore_mem>>
      %169 = tpu.memref_squeeze %168 : memref<1x!tpu.dma_semaphore, #tpu.memory_space<semaphore_mem>> -> memref<!tpu.dma_semaphore, #tpu.memory_space<semaphore_mem>>
      tpu.enqueue_dma source(%165 : memref<128xf32, #tpu.memory_space<any>>) target(%167 : memref<128xf32, #tpu.memory_space<vmem>>) target_semaphore(%169 : memref<!tpu.dma_semaphore, #tpu.memory_space<semaphore_mem>>)
      %c1_i32_78 = arith.constant 1 : i32
      %170 = arith.addi %160, %c1_i32_78 : i32
      %171 = arith.index_cast %170 : i32 to index
      %172 = memref.load %arg1[%171] : memref<16xi32, #tpu.memory_space<smem>>
      %c0_i32_79 = arith.constant 0 : i32
      %173 = tpu.memref_slice %arg7[%172, %c0_i32_79] : memref<64x128xf32, #tpu.memory_space<any>> -> memref<1x128xf32, #tpu.memory_space<any>>
      %174 = tpu.memref_squeeze %173 : memref<1x128xf32, #tpu.memory_space<any>> -> memref<128xf32, #tpu.memory_space<any>>
      %c0_i32_80 = arith.constant 0 : i32
      %175 = tpu.memref_slice %arg9[%157, %c1_i32_78, %c0_i32_80] : memref<2x8x128xf32, #tpu.memory_space<vmem>> -> memref<1x1x128xf32, #tpu.memory_space<vmem>>
      %176 = tpu.memref_squeeze %175 : memref<1x1x128xf32, #tpu.memory_space<vmem>> -> memref<128xf32, #tpu.memory_space<vmem>>
      %177 = tpu.memref_slice %arg10[%157] : memref<2x!tpu.dma_semaphore, #tpu.memory_space<semaphore_mem>> -> memref<1x!tpu.dma_semaphore, #tpu.memory_space<semaphore_mem>>
      %178 = tpu.memref_squeeze %177 : memref<1x!tpu.dma_semaphore, #tpu.memory_space<semaphore_mem>> -> memref<!tpu.dma_semaphore, #tpu.memory_space<semaphore_mem>>
      tpu.enqueue_dma source(%174 : memref<128xf32, #tpu.memory_space<any>>) target(%176 : memref<128xf32, #tpu.memory_space<vmem>>) target_semaphore(%178 : memref<!tpu.dma_semaphore, #tpu.memory_space<semaphore_mem>>)
      %c2_i32_81 = arith.constant 2 : i32
      %179 = arith.addi %160, %c2_i32_81 : i32
      %180 = arith.index_cast %179 : i32 to index
      %181 = memref.load %arg1[%180] : memref<16xi32, #tpu.memory_space<smem>>
      %c0_i32_82 = arith.constant 0 : i32
      %182 = tpu.memref_slice %arg7[%181, %c0_i32_82] : memref<64x128xf32, #tpu.memory_space<any>> -> memref<1x128xf32, #tpu.memory_space<any>>
      %183 = tpu.memref_squeeze %182 : memref<1x128xf32, #tpu.memory_space<any>> -> memref<128xf32, #tpu.memory_space<any>>
      %c0_i32_83 = arith.constant 0 : i32
      %184 = tpu.memref_slice %arg9[%157, %c2_i32_81, %c0_i32_83] : memref<2x8x128xf32, #tpu.memory_space<vmem>> -> memref<1x1x128xf32, #tpu.memory_space<vmem>>
      %185 = tpu.memref_squeeze %184 : memref<1x1x128xf32, #tpu.memory_space<vmem>> -> memref<128xf32, #tpu.memory_space<vmem>>
      %186 = tpu.memref_slice %arg10[%157] : memref<2x!tpu.dma_semaphore, #tpu.memory_space<semaphore_mem>> -> memref<1x!tpu.dma_semaphore, #tpu.memory_space<semaphore_mem>>
      %187 = tpu.memref_squeeze %186 : memref<1x!tpu.dma_semaphore, #tpu.memory_space<semaphore_mem>> -> memref<!tpu.dma_semaphore, #tpu.memory_space<semaphore_mem>>
      tpu.enqueue_dma source(%183 : memref<128xf32, #tpu.memory_space<any>>) target(%185 : memref<128xf32, #tpu.memory_space<vmem>>) target_semaphore(%187 : memref<!tpu.dma_semaphore, #tpu.memory_space<semaphore_mem>>)
      %c3_i32_84 = arith.constant 3 : i32
      %188 = arith.addi %160, %c3_i32_84 : i32
      %189 = arith.index_cast %188 : i32 to index
      %190 = memref.load %arg1[%189] : memref<16xi32, #tpu.memory_space<smem>>
      %c0_i32_85 = arith.constant 0 : i32
      %191 = tpu.memref_slice %arg7[%190, %c0_i32_85] : memref<64x128xf32, #tpu.memory_space<any>> -> memref<1x128xf32, #tpu.memory_space<any>>
      %192 = tpu.memref_squeeze %191 : memref<1x128xf32, #tpu.memory_space<any>> -> memref<128xf32, #tpu.memory_space<any>>
      %c0_i32_86 = arith.constant 0 : i32
      %193 = tpu.memref_slice %arg9[%157, %c3_i32_84, %c0_i32_86] : memref<2x8x128xf32, #tpu.memory_space<vmem>> -> memref<1x1x128xf32, #tpu.memory_space<vmem>>
      %194 = tpu.memref_squeeze %193 : memref<1x1x128xf32, #tpu.memory_space<vmem>> -> memref<128xf32, #tpu.memory_space<vmem>>
      %195 = tpu.memref_slice %arg10[%157] : memref<2x!tpu.dma_semaphore, #tpu.memory_space<semaphore_mem>> -> memref<1x!tpu.dma_semaphore, #tpu.memory_space<semaphore_mem>>
      %196 = tpu.memref_squeeze %195 : memref<1x!tpu.dma_semaphore, #tpu.memory_space<semaphore_mem>> -> memref<!tpu.dma_semaphore, #tpu.memory_space<semaphore_mem>>
      tpu.enqueue_dma source(%192 : memref<128xf32, #tpu.memory_space<any>>) target(%194 : memref<128xf32, #tpu.memory_space<vmem>>) target_semaphore(%196 : memref<!tpu.dma_semaphore, #tpu.memory_space<semaphore_mem>>)
      %c4_i32_87 = arith.constant 4 : i32
      %197 = arith.addi %160, %c4_i32_87 : i32
      %198 = arith.index_cast %197 : i32 to index
      %199 = memref.load %arg1[%198] : memref<16xi32, #tpu.memory_space<smem>>
      %c0_i32_88 = arith.constant 0 : i32
      %200 = tpu.memref_slice %arg7[%199, %c0_i32_88] : memref<64x128xf32, #tpu.memory_space<any>> -> memref<1x128xf32, #tpu.memory_space<any>>
      %201 = tpu.memref_squeeze %200 : memref<1x128xf32, #tpu.memory_space<any>> -> memref<128xf32, #tpu.memory_space<any>>
      %c0_i32_89 = arith.constant 0 : i32
      %202 = tpu.memref_slice %arg9[%157, %c4_i32_87, %c0_i32_89] : memref<2x8x128xf32, #tpu.memory_space<vmem>> -> memref<1x1x128xf32, #tpu.memory_space<vmem>>
      %203 = tpu.memref_squeeze %202 : memref<1x1x128xf32, #tpu.memory_space<vmem>> -> memref<128xf32, #tpu.memory_space<vmem>>
      %204 = tpu.memref_slice %arg10[%157] : memref<2x!tpu.dma_semaphore, #tpu.memory_space<semaphore_mem>> -> memref<1x!tpu.dma_semaphore, #tpu.memory_space<semaphore_mem>>
      %205 = tpu.memref_squeeze %204 : memref<1x!tpu.dma_semaphore, #tpu.memory_space<semaphore_mem>> -> memref<!tpu.dma_semaphore, #tpu.memory_space<semaphore_mem>>
      tpu.enqueue_dma source(%201 : memref<128xf32, #tpu.memory_space<any>>) target(%203 : memref<128xf32, #tpu.memory_space<vmem>>) target_semaphore(%205 : memref<!tpu.dma_semaphore, #tpu.memory_space<semaphore_mem>>)
      %c5_i32_90 = arith.constant 5 : i32
      %206 = arith.addi %160, %c5_i32_90 : i32
      %207 = arith.index_cast %206 : i32 to index
      %208 = memref.load %arg1[%207] : memref<16xi32, #tpu.memory_space<smem>>
      %c0_i32_91 = arith.constant 0 : i32
      %209 = tpu.memref_slice %arg7[%208, %c0_i32_91] : memref<64x128xf32, #tpu.memory_space<any>> -> memref<1x128xf32, #tpu.memory_space<any>>
      %210 = tpu.memref_squeeze %209 : memref<1x128xf32, #tpu.memory_space<any>> -> memref<128xf32, #tpu.memory_space<any>>
      %c0_i32_92 = arith.constant 0 : i32
      %211 = tpu.memref_slice %arg9[%157, %c5_i32_90, %c0_i32_92] : memref<2x8x128xf32, #tpu.memory_space<vmem>> -> memref<1x1x128xf32, #tpu.memory_space<vmem>>
      %212 = tpu.memref_squeeze %211 : memref<1x1x128xf32, #tpu.memory_space<vmem>> -> memref<128xf32, #tpu.memory_space<vmem>>
      %213 = tpu.memref_slice %arg10[%157] : memref<2x!tpu.dma_semaphore, #tpu.memory_space<semaphore_mem>> -> memref<1x!tpu.dma_semaphore, #tpu.memory_space<semaphore_mem>>
      %214 = tpu.memref_squeeze %213 : memref<1x!tpu.dma_semaphore, #tpu.memory_space<semaphore_mem>> -> memref<!tpu.dma_semaphore, #tpu.memory_space<semaphore_mem>>
      tpu.enqueue_dma source(%210 : memref<128xf32, #tpu.memory_space<any>>) target(%212 : memref<128xf32, #tpu.memory_space<vmem>>) target_semaphore(%214 : memref<!tpu.dma_semaphore, #tpu.memory_space<semaphore_mem>>)
      %c6_i32_93 = arith.constant 6 : i32
      %215 = arith.addi %160, %c6_i32_93 : i32
      %216 = arith.index_cast %215 : i32 to index
      %217 = memref.load %arg1[%216] : memref<16xi32, #tpu.memory_space<smem>>
      %c0_i32_94 = arith.constant 0 : i32
      %218 = tpu.memref_slice %arg7[%217, %c0_i32_94] : memref<64x128xf32, #tpu.memory_space<any>> -> memref<1x128xf32, #tpu.memory_space<any>>
      %219 = tpu.memref_squeeze %218 : memref<1x128xf32, #tpu.memory_space<any>> -> memref<128xf32, #tpu.memory_space<any>>
      %c0_i32_95 = arith.constant 0 : i32
      %220 = tpu.memref_slice %arg9[%157, %c6_i32_93, %c0_i32_95] : memref<2x8x128xf32, #tpu.memory_space<vmem>> -> memref<1x1x128xf32, #tpu.memory_space<vmem>>
      %221 = tpu.memref_squeeze %220 : memref<1x1x128xf32, #tpu.memory_space<vmem>> -> memref<128xf32, #tpu.memory_space<vmem>>
      %222 = tpu.memref_slice %arg10[%157] : memref<2x!tpu.dma_semaphore, #tpu.memory_space<semaphore_mem>> -> memref<1x!tpu.dma_semaphore, #tpu.memory_space<semaphore_mem>>
      %223 = tpu.memref_squeeze %222 : memref<1x!tpu.dma_semaphore, #tpu.memory_space<semaphore_mem>> -> memref<!tpu.dma_semaphore, #tpu.memory_space<semaphore_mem>>
      tpu.enqueue_dma source(%219 : memref<128xf32, #tpu.memory_space<any>>) target(%221 : memref<128xf32, #tpu.memory_space<vmem>>) target_semaphore(%223 : memref<!tpu.dma_semaphore, #tpu.memory_space<semaphore_mem>>)
      %c7_i32_96 = arith.constant 7 : i32
      %224 = arith.addi %160, %c7_i32_96 : i32
      %225 = arith.index_cast %224 : i32 to index
      %226 = memref.load %arg1[%225] : memref<16xi32, #tpu.memory_space<smem>>
      %c0_i32_97 = arith.constant 0 : i32
      %227 = tpu.memref_slice %arg7[%226, %c0_i32_97] : memref<64x128xf32, #tpu.memory_space<any>> -> memref<1x128xf32, #tpu.memory_space<any>>
      %228 = tpu.memref_squeeze %227 : memref<1x128xf32, #tpu.memory_space<any>> -> memref<128xf32, #tpu.memory_space<any>>
      %c0_i32_98 = arith.constant 0 : i32
      %229 = tpu.memref_slice %arg9[%157, %c7_i32_96, %c0_i32_98] : memref<2x8x128xf32, #tpu.memory_space<vmem>> -> memref<1x1x128xf32, #tpu.memory_space<vmem>>
      %230 = tpu.memref_squeeze %229 : memref<1x1x128xf32, #tpu.memory_space<vmem>> -> memref<128xf32, #tpu.memory_space<vmem>>
      %231 = tpu.memref_slice %arg10[%157] : memref<2x!tpu.dma_semaphore, #tpu.memory_space<semaphore_mem>> -> memref<1x!tpu.dma_semaphore, #tpu.memory_space<semaphore_mem>>
      %232 = tpu.memref_squeeze %231 : memref<1x!tpu.dma_semaphore, #tpu.memory_space<semaphore_mem>> -> memref<!tpu.dma_semaphore, #tpu.memory_space<semaphore_mem>>
      tpu.enqueue_dma source(%228 : memref<128xf32, #tpu.memory_space<any>>) target(%230 : memref<128xf32, #tpu.memory_space<vmem>>) target_semaphore(%232 : memref<!tpu.dma_semaphore, #tpu.memory_space<semaphore_mem>>)
      %c8_i32_99 = arith.constant 8 : i32
    } else {
    }
    %c0_i32_44 = arith.constant 0 : i32
    %c0_i32_45 = arith.constant 0 : i32
    %88 = tpu.memref_slice %arg7[%c0_i32_44, %c0_i32_45] : memref<64x128xf32, #tpu.memory_space<any>> -> memref<8x128xf32, #tpu.memory_space<any>>
    %c0_i32_46 = arith.constant 0 : i32
    %c0_i32_47 = arith.constant 0 : i32
    %89 = tpu.memref_slice %arg9[%83, %c0_i32_46, %c0_i32_47] : memref<2x8x128xf32, #tpu.memory_space<vmem>> -> memref<1x8x128xf32, #tpu.memory_space<vmem>>
    %90 = tpu.memref_squeeze %89 : memref<1x8x128xf32, #tpu.memory_space<vmem>> -> memref<8x128xf32, #tpu.memory_space<vmem>>
    %91 = tpu.memref_slice %arg10[%83] : memref<2x!tpu.dma_semaphore, #tpu.memory_space<semaphore_mem>> -> memref<1x!tpu.dma_semaphore, #tpu.memory_space<semaphore_mem>>
    %92 = tpu.memref_squeeze %91 : memref<1x!tpu.dma_semaphore, #tpu.memory_space<semaphore_mem>> -> memref<!tpu.dma_semaphore, #tpu.memory_space<semaphore_mem>>
    tpu.wait_dma2 semaphore(%92 : memref<!tpu.dma_semaphore, #tpu.memory_space<semaphore_mem>>) src(%88 : memref<8x128xf32, #tpu.memory_space<any>>) dst(%90 : memref<8x128xf32, #tpu.memory_space<vmem>>)
    %c1_i32_48 = arith.constant 1 : i32
    %93 = arith.muli %arg0, %c1_i32_48 : i32
    %94 = arith.addi %93, %c0_i32_34 : i32
    %95 = arith.index_cast %94 : i32 to index
    %c0 = arith.constant 0 : index
    %96 = vector.load %arg2[%95, %c0] : memref<2x8xi32, #tpu.memory_space<vmem>>, vector<1x8xi32>
    %97 = arith.index_cast %94 : i32 to index
    %c0_49 = arith.constant 0 : index
    %98 = vector.load %arg3[%97, %c0_49] : memref<2x8xi32, #tpu.memory_space<vmem>>, vector<1x8xi32>
    %99 = tpu.iota {dimensions = array<i32: 0>} : vector<8x8xi32>
    %100 = tpu.iota {dimensions = array<i32: 1>} : vector<8x8xi32>
    %101 = arith.cmpi eq, %99, %100 : vector<8x8xi32>
    %c0_i32_50 = arith.constant 0 : i32
    %102 = vector.shape_cast %96 : vector<1x8xi32> to vector<1x8xi32>
    %103 = vector.broadcast %102 : vector<1x8xi32> to vector<8x8xi32>
    %104 = vector.broadcast %c0_i32_50 : i32 to vector<8x8xi32>
    %105 = arith.select %101, %103, %104 : vector<8x8xi1>, vector<8x8xi32>
    %cst = arith.constant dense<0> : vector<8xi32>
    %106 = vector.multi_reduction <add>, %105, %cst [1] : vector<8x8xi32> to vector<8xi32>
    %107 = vector.shape_cast %106 : vector<8xi32> to vector<8x1xi32>
    %c0_i32_51 = arith.constant 0 : i32
    %108 = vector.shape_cast %98 : vector<1x8xi32> to vector<1x8xi32>
    %109 = vector.broadcast %108 : vector<1x8xi32> to vector<8x8xi32>
    %110 = vector.broadcast %c0_i32_51 : i32 to vector<8x8xi32>
    %111 = arith.select %101, %109, %110 : vector<8x8xi1>, vector<8x8xi32>
    %cst_52 = arith.constant dense<0> : vector<8xi32>
    %112 = vector.multi_reduction <add>, %111, %cst_52 [1] : vector<8x8xi32> to vector<8xi32>
    %113 = vector.shape_cast %112 : vector<8xi32> to vector<8x1xi32>
    %114 = tpu.iota {dimensions = array<i32: 1>} : vector<8x66xi32>
    %115 = vector.broadcast %107 : vector<8x1xi32> to vector<8x66xi32>
    %116 = arith.cmpi eq, %114, %115 : vector<8x66xi32>
    %117 = vector.broadcast %113 : vector<8x1xi32> to vector<8x66xi32>
    %118 = arith.cmpi eq, %114, %117 : vector<8x66xi32>
    %119 = arith.ori %116, %118 : vector<8x66xi1>
    %120 = arith.extui %119 : vector<8x66xi1> to vector<8x66xi32>
    %121 = arith.sitofp %120 : vector<8x66xi32> to vector<8x66xf32>
    %c0_53 = arith.constant 0 : index
    %c0_54 = arith.constant 0 : index
    %122 = vector.load %arg4[%c0_53, %c0_54] : memref<66x128xf32, #tpu.memory_space<vmem>>, vector<66x128xf32>
    %cst_55 = arith.constant dense<0.000000e+00> : vector<8x128xf32>
    %123 = tpu.matmul %121, %122, %cst_55 {dimension_numbers = #tpu.dot_dimension_numbers<[1], [0], [0], [1], [0, 0, 1, 1], [], []>} : vector<8x66xf32>, vector<66x128xf32>, vector<8x128xf32> -> vector<8x128xf32>
    %124 = arith.index_cast %83 : i32 to index
    %c0_56 = arith.constant 0 : index
    %c0_57 = arith.constant 0 : index
    %125 = vector.load %arg9[%124, %c0_56, %c0_57] : memref<2x8x128xf32, #tpu.memory_space<vmem>>, vector<1x8x128xf32>
    %126 = vector.shape_cast %125 : vector<1x8x128xf32> to vector<8x128xf32>
    %127 = arith.addf %126, %123 : vector<8x128xf32>
    %cst_58 = arith.constant dense<0.000000e+00> : vector<8xf32>
    %128 = vector.multi_reduction <add>, %127, %cst_58 [1] : vector<8x128xf32> to vector<8xf32>
    %129 = vector.shape_cast %128 : vector<8xf32> to vector<8x1xf32>
    %cst_59 = arith.constant 1.280000e+02 : f32
    %130 = vector.broadcast %cst_59 : f32 to vector<8x1xf32>
    %131 = arith.divf %129, %130 : vector<8x1xf32>
    %132 = vector.broadcast %131 : vector<8x1xf32> to vector<8x128xf32>
    %133 = arith.subf %127, %132 : vector<8x128xf32>
    %134 = arith.mulf %133, %133 : vector<8x128xf32>
    %cst_60 = arith.constant dense<0.000000e+00> : vector<8xf32>
    %135 = vector.multi_reduction <add>, %134, %cst_60 [1] : vector<8x128xf32> to vector<8xf32>
    %136 = vector.shape_cast %135 : vector<8xf32> to vector<8x1xf32>
    %cst_61 = arith.constant 1.280000e+02 : f32
    %137 = vector.broadcast %cst_61 : f32 to vector<8x1xf32>
    %138 = arith.divf %136, %137 : vector<8x1xf32>
    %cst_62 = arith.constant 9.99999996E-13 : f32
    %139 = vector.broadcast %cst_62 : f32 to vector<8x1xf32>
    %140 = arith.addf %138, %139 : vector<8x1xf32>
    %141 = math.rsqrt %140 : vector<8x1xf32>
    %142 = vector.broadcast %141 : vector<8x1xf32> to vector<8x128xf32>
    %143 = arith.mulf %133, %142 : vector<8x128xf32>
    %c0_63 = arith.constant 0 : index
    %c0_64 = arith.constant 0 : index
    %144 = vector.load %arg5[%c0_63, %c0_64] : memref<1x128xf32, #tpu.memory_space<vmem>>, vector<1x128xf32>
    %145 = vector.broadcast %144 : vector<1x128xf32> to vector<8x128xf32>
    %146 = arith.mulf %143, %145 : vector<8x128xf32>
    %c0_65 = arith.constant 0 : index
    %c0_66 = arith.constant 0 : index
    %147 = vector.load %arg6[%c0_65, %c0_66] : memref<1x128xf32, #tpu.memory_space<vmem>>, vector<1x128xf32>
    %148 = vector.broadcast %147 : vector<1x128xf32> to vector<8x128xf32>
    %149 = arith.addf %146, %148 : vector<8x128xf32>
    %c8_i32_67 = arith.constant 8 : i32
    %150 = arith.muli %c0_i32_34, %c8_i32_67 : i32
    %151 = tpu.assume_multiple %150, 8 : i32
    %c0_68 = arith.constant 0 : index
    %152 = arith.index_cast %151 : i32 to index
    %c0_69 = arith.constant 0 : index
    %153 = vector.load %arg8[%c0_68, %152, %c0_69] : memref<1x8x128xf32, #tpu.memory_space<vmem>>, vector<1x8x128xf32>
    %154 = vector.shape_cast %153 : vector<1x8x128xf32> to vector<8x128xf32>
    %155 = vector.shape_cast %149 : vector<8x128xf32> to vector<1x8x128xf32>
    tpu.vector_store %arg8[%c0_68, %152, %c0_69], %155 {strides = array<i32>} : memref<1x8x128xf32, #tpu.memory_space<vmem>>, vector<1x8x128xf32>,
    %c1_i32_70 = arith.constant 1 : i32
    return
  }
  func.func @transform_0(%arg0: i32, %arg1: memref<16xi32, #tpu.memory_space<smem>>) -> (i32, i32) {
    %c0_i32 = arith.constant 0 : i32
    %c0_i32_0 = arith.constant 0 : i32
    %c0_i32_1 = arith.constant 0 : i32
    return %c0_i32, %c0_i32_0 : i32, i32
  }
  func.func @transform_1(%arg0: i32, %arg1: memref<16xi32, #tpu.memory_space<smem>>) -> (i32, i32) {
    %c0_i32 = arith.constant 0 : i32
    %c0_i32_0 = arith.constant 0 : i32
    %c0_i32_1 = arith.constant 0 : i32
    return %c0_i32, %c0_i32_0 : i32, i32
  }
  func.func @transform_2(%arg0: i32, %arg1: memref<16xi32, #tpu.memory_space<smem>>) -> (i32, i32) {
    %c0_i32 = arith.constant 0 : i32
    %c0_i32_0 = arith.constant 0 : i32
    %c0_i32_1 = arith.constant 0 : i32
    return %c0_i32, %c0_i32_0 : i32, i32
  }
  func.func @transform_3(%arg0: i32, %arg1: memref<16xi32, #tpu.memory_space<smem>>) -> (i32, i32) {
    %c0_i32 = arith.constant 0 : i32
    %c0_i32_0 = arith.constant 0 : i32
    %c0_i32_1 = arith.constant 0 : i32
    return %c0_i32, %c0_i32_0 : i32, i32
  }
  func.func @transform_4(%arg0: i32, %arg1: memref<16xi32, #tpu.memory_space<smem>>) -> (i32, i32) {
    %c0_i32 = arith.constant 0 : i32
    %c0_i32_0 = arith.constant 0 : i32
    %c0_i32_1 = arith.constant 0 : i32
    return %c0_i32, %c0_i32_0 : i32, i32
  }
  func.func @transform_6(%arg0: i32, %arg1: memref<16xi32, #tpu.memory_space<smem>>) -> (i32, i32, i32) {
    %c0_i32 = arith.constant 0 : i32
    %c0_i32_0 = arith.constant 0 : i32
    %c0_i32_1 = arith.constant 0 : i32
    return %arg0, %c0_i32, %c0_i32_0 : i32, i32, i32
  }
}

</mosaic_0001>

<llo_original>
// kernel: tpu_custom_call.1
$region0: #{tpu_custom_call.1}
  #allocation0 [shape = 'u32[]', space=smem, size = 0x4, offset = 0x4, fixed_abs, tag = 'smem constant byte address 0x4 - core index']
  #allocation1 [shape = 'u32[144,128]{1,0:T(1,128)}', space=vmem, size = 0x12000, scoped, tag = 'internal scratch']
  #allocation2 [shape = 'f32[2,8,128]{2,1,0:T(8,128)}', space=vmem, size = 0x2000, scoped, tag = 'scratch operand']
  #allocation3 [shape = 's32[2]{0}', space=sflag, size = 0x8, scoped, tag = 'scratch operand']
  #allocation4 [shape = 's32[1]{0}', space=sflag, size = 0x4, scoped, tag = 'scoped memory for tpu_custom_call.1']
  #allocation5 [shape = 'u8[512]{0}', space=smem, size = 0x200, scoped, tag = 'prefetched SMEM operand 0']
  #allocation10 [shape = 's32[]', space=sflag, size = 0x4, offset = 0, fixed_abs, tag = 'sflag constant byte address 0x0 - dummy sync flag']
  #allocation11 [shape = 's32[]', space=sflag, size = 0x4, offset = 0, fixed_abs, tag = 'sflag constant byte address 0x0 - dummy sync flag']
  #allocation12 [shape = 'u32[]', space=smem, size = 0x4, offset = 0x44, fixed_abs, tag = 'smem constant byte address 0x44 - assertion arg 0']
  #allocation13 [shape = 'u32[]', space=smem, size = 0x4, offset = 0x48, fixed_abs, tag = 'smem constant byte address 0x48 - assertion arg 1']
  #allocation14 [shape = 's32[]', space=sflag, size = 0x4, offset = 0, fixed_abs, tag = 'sflag constant byte address 0x0 - dummy sync flag']
  #allocation15 [shape = 's32[]', space=sflag, size = 0x4, offset = 0, fixed_abs, tag = 'sflag constant byte address 0x0 - dummy sync flag']
  #allocation16 [shape = 's32[]', space=sflag, size = 0x4, offset = 0, fixed_abs, tag = 'sflag constant byte address 0x0 - dummy sync flag']
  #allocation17 [shape = 's32[]', space=sflag, size = 0x4, offset = 0, fixed_abs, tag = 'sflag constant byte address 0x0 - dummy sync flag']
  #allocation18 [shape = 's32[]', space=sflag, size = 0x4, offset = 0, fixed_abs, tag = 'sflag constant byte address 0x0 - dummy sync flag']
  #allocation19 [shape = 's32[]', space=sflag, size = 0x4, offset = 0, fixed_abs, tag = 'sflag constant byte address 0x0 - dummy sync flag']
  #allocation20 [shape = 's32[]', space=sflag, size = 0x4, offset = 0, fixed_abs, tag = 'sflag constant byte address 0x0 - dummy sync flag']
  #allocation21 [shape = 's32[]', space=sflag, size = 0x4, offset = 0, fixed_abs, tag = 'sflag constant byte address 0x0 - dummy sync flag']
  #allocation22 [shape = 's32[]', space=sflag, size = 0x4, offset = 0, fixed_abs, tag = 'sflag constant byte address 0x0 - dummy sync flag']
  #allocation23 [shape = 's32[]', space=sflag, size = 0x4, offset = 0, fixed_abs, tag = 'sflag constant byte address 0x0 - dummy sync flag']
  #allocation24 [shape = 's32[]', space=sflag, size = 0x4, offset = 0, fixed_abs, tag = 'sflag constant byte address 0x0 - dummy sync flag']
  #allocation25 [shape = 's32[]', space=sflag, size = 0x4, offset = 0, fixed_abs, tag = 'sflag constant byte address 0x0 - dummy sync flag']
  #allocation26 [shape = 's32[]', space=sflag, size = 0x4, offset = 0, fixed_abs, tag = 'sflag constant byte address 0x0 - dummy sync flag']
  #allocation27 [shape = 's32[]', space=sflag, size = 0x4, offset = 0, fixed_abs, tag = 'sflag constant byte address 0x0 - dummy sync flag']
  %s0 = inlined_call_operand.hbm [shape: s32[16], index: 0, kind: input, shape index: {}]
  %s1 = inlined_call_operand.vmem [shape: s32[2,8], index: 1, kind: input, shape index: {}]
  %s2 = inlined_call_operand.vmem [shape: s32[2,8], index: 2, kind: input, shape index: {}]
  %s3 = inlined_call_operand.hbm [shape: f32[66,128], index: 3, kind: input, shape index: {}]
  %s4 = inlined_call_operand.vmem [shape: f32[1,128], index: 4, kind: input, shape index: {}]
  %s5 = inlined_call_operand.vmem [shape: f32[1,128], index: 5, kind: input, shape index: {}]
  %s6 = inlined_call_operand.hbm [shape: f32[64,128], index: 6, kind: input, shape index: {}]
  %s7 = inlined_call_operand.hbm [shape: f32[2,8,128], index: 7, kind: output, shape index: {}]
  %s8 = sld [smem:[#allocation0]]
  $region89: #{tpu_custom_call.1} parent=0
    _
  %s10 = ssub.s32 1, %s8
  %s11 = scalar_select 0, %s10, %s8
  %13 = dma.hbm_to_smem %s0, 16, [#allocation5], [#allocation4]
  %14 = dma.done [#allocation4], 16
  %15 = sfence
  $region1: #{tpu_custom_call.1} parent=0
    #allocation6 [shape = 'u8[36864]{0}', space=vmem, size = 0x9000, scoped, tag = 'input window, operand 3, single buffered']
    #allocation7 [shape = 's32[2]{0}', space=sflag, size = 0x8, scoped, tag = 'scoped memory for tpu_custom_call.1']
    #allocation8 [shape = 's32[2]{0}', space=sflag, size = 0x8, scoped, tag = 'scoped memory for tpu_custom_call.1']
    #allocation9 [shape = 'u8[8192]{0}', space=vmem, size = 0x2000, scoped, tag = 'output window, operand 0']
    %16 = vsyncpa [#allocation7], 0
    %17 = vsyncpa [#allocation8], 0
    %s18 = scalar_lea.sflag [#allocation8], 1
    %19 = vsyncpa %s18, 0
    loop: start=0, step=1, limit=4
    $region2: #{tpu_custom_call.1} parent=1 // loop_pre_header
      _
    $region3: #{tpu_custom_call.1} parent=1 // loop_header
      %s21 = sphi 0, %s25
      %p22 = scmp.ge.s32.totalorder %s21, 4
      %s29 = sphi 0, %s29
      %s31 = sphi 0, %s29
      %s32 = sphi 0, %s31
      %s46 = sphi 0, %s32
      %s50 = sphi 0, %s50
      %s52 = sphi 0, %s50
      %s53 = sphi 0, %s52
      %s67 = sphi 0, %s53
      %s71 = sphi 0, %s71
      %s73 = sphi 0, %s71
      %s74 = sphi 0, %s73
      %s88 = sphi 0, %s74
      %s92 = sphi 0, %s92
      %s94 = sphi 0, %s92
      %s95 = sphi 0, %s94
      %s109 = sphi 0, %s95
      %s113 = sphi 0, %s113
      %s115 = sphi 0, %s113
      %s116 = sphi 0, %s115
      %s130 = sphi 0, %s116
      %s136 = sphi 0, %s138
      %s139 = sphi 0, %s136
      %s140 = sphi 0, %s139
      %s156 = sphi 0, %s140
    $region4: #{tpu_custom_call.1} parent=1 // loop_header_branch
      %24 = sbr.rel (%p22) target = $region8
    $region5: #{tpu_custom_call.1} parent=1 // loop_body
      %s26 = ssub.s32 %s21, 1
      %s27 = ssub.s32 %s21, 2
      %s28 = sadd.s32 %s21, 1
      %s30 = sadd.s32 %s29, 1
      %p33 = scmp.eq.s32.totalorder %s21, 1
      %p34 = scmp.ne.s32.totalorder %s29, %s31
      %p35 = scmp.eq.s32.totalorder %s21, 0
      %p36 = por %p34, %p35
      %p37 = scmp.ne.s32.totalorder %s29, %s31
      %p38 = scmp.eq.s32.totalorder %s26, 1
      %p39 = por %p37, %p38
      %p40 = scmp.ne.s32.totalorder %s31, %s32
      %p41 = scmp.eq.s32.totalorder %s26, 0
      %p42 = por %p40, %p41
      %p43 = scmp.ne.s32.totalorder %s31, %s32
      %p44 = scmp.eq.s32.totalorder %s27, 1
      %p45 = por %p43, %p44
      %p47 = scmp.ne.s32.totalorder %s32, %s46
      %p48 = scmp.eq.s32.totalorder %s27, 0
      %p49 = por %p47, %p48
      %s51 = sadd.s32 %s50, 1
      %p54 = scmp.eq.s32.totalorder %s21, 1
      %p55 = scmp.ne.s32.totalorder %s50, %s52
      %p56 = scmp.eq.s32.totalorder %s21, 0
      %p57 = por %p55, %p56
      %p58 = scmp.ne.s32.totalorder %s50, %s52
      %p59 = scmp.eq.s32.totalorder %s26, 1
      %p60 = por %p58, %p59
      %p61 = scmp.ne.s32.totalorder %s52, %s53
      %p62 = scmp.eq.s32.totalorder %s26, 0
      %p63 = por %p61, %p62
      %p64 = scmp.ne.s32.totalorder %s52, %s53
      %p65 = scmp.eq.s32.totalorder %s27, 1
      %p66 = por %p64, %p65
      %p68 = scmp.ne.s32.totalorder %s53, %s67
      %p69 = scmp.eq.s32.totalorder %s27, 0
      %p70 = por %p68, %p69
      %s72 = sadd.s32 %s71, 1
      %p75 = scmp.eq.s32.totalorder %s21, 1
      %p76 = scmp.ne.s32.totalorder %s71, %s73
      %p77 = scmp.eq.s32.totalorder %s21, 0
      %p78 = por %p76, %p77
      %p79 = scmp.ne.s32.totalorder %s71, %s73
      %p80 = scmp.eq.s32.totalorder %s26, 1
      %p81 = por %p79, %p80
      %p82 = scmp.ne.s32.totalorder %s73, %s74
      %p83 = scmp.eq.s32.totalorder %s26, 0
      %p84 = por %p82, %p83
      %p85 = scmp.ne.s32.totalorder %s73, %s74
      %p86 = scmp.eq.s32.totalorder %s27, 1
      %p87 = por %p85, %p86
      %p89 = scmp.ne.s32.totalorder %s74, %s88
      %p90 = scmp.eq.s32.totalorder %s27, 0
      %p91 = por %p89, %p90
      %s93 = sadd.s32 %s92, 1
      %p96 = scmp.eq.s32.totalorder %s21, 1
      %p97 = scmp.ne.s32.totalorder %s92, %s94
      %p98 = scmp.eq.s32.totalorder %s21, 0
      %p99 = por %p97, %p98
      %p100 = scmp.ne.s32.totalorder %s92, %s94
      %p101 = scmp.eq.s32.totalorder %s26, 1
      %p102 = por %p100, %p101
      %p103 = scmp.ne.s32.totalorder %s94, %s95
      %p104 = scmp.eq.s32.totalorder %s26, 0
      %p105 = por %p103, %p104
      %p106 = scmp.ne.s32.totalorder %s94, %s95
      %p107 = scmp.eq.s32.totalorder %s27, 1
      %p108 = por %p106, %p107
      %p110 = scmp.ne.s32.totalorder %s95, %s109
      %p111 = scmp.eq.s32.totalorder %s27, 0
      %p112 = por %p110, %p111
      %s114 = sadd.s32 %s113, 1
      %p117 = scmp.eq.s32.totalorder %s21, 1
      %p118 = scmp.ne.s32.totalorder %s113, %s115
      %p119 = scmp.eq.s32.totalorder %s21, 0
      %p120 = por %p118, %p119
      %p121 = scmp.ne.s32.totalorder %s113, %s115
      %p122 = scmp.eq.s32.totalorder %s26, 1
      %p123 = por %p121, %p122
      %p124 = scmp.ne.s32.totalorder %s115, %s116
      %p125 = scmp.eq.s32.totalorder %s26, 0
      %p126 = por %p124, %p125
      %p127 = scmp.ne.s32.totalorder %s115, %s116
      %p128 = scmp.eq.s32.totalorder %s27, 1
      %p129 = por %p127, %p128
      %p131 = scmp.ne.s32.totalorder %s116, %s130
      %p132 = scmp.eq.s32.totalorder %s27, 0
      %p133 = por %p131, %p132
      %s134 = ssub.s32 %s21, %s28
      %p135 = scmp.eq.s32.totalorder %s134, 0
      %s137 = sadd.s32 %s136, 1
      %s138 = scalar_select %p135, %s136, %s137
      %p141 = pneg %p135
      %p142 = scmp.eq.s32.totalorder %s21, 1
      %p143 = por %p141, %p142
      %p144 = scmp.ne.s32.totalorder %s136, %s139
      %p145 = scmp.eq.s32.totalorder %s21, 0
      %p146 = por %p144, %p145
      %p147 = scmp.ne.s32.totalorder %s136, %s139
      %p148 = scmp.eq.s32.totalorder %s26, 1
      %p149 = por %p147, %p148
      %p150 = scmp.ne.s32.totalorder %s139, %s140
      %p151 = scmp.eq.s32.totalorder %s26, 0
      %p152 = por %p150, %p151
      %p153 = scmp.ne.s32.totalorder %s139, %s140
      %p154 = scmp.eq.s32.totalorder %s27, 1
      %p155 = por %p153, %p154
      %p157 = scmp.ne.s32.totalorder %s140, %s156
      %p158 = scmp.eq.s32.totalorder %s27, 0
      %p159 = por %p157, %p158
      %p160 = scmp.le.s32.totalorder 1, %s21
      %p161 = scmp.lt.s32.totalorder %s21, 3
      %p162 = pnand %p160, %p161
      %p163 = pneg %p162
      // Predicated region
      $region9: #{tpu_custom_call.1} parent=5 // pred_check
        _
      $region10: #{tpu_custom_call.1} parent=5 // pred_check_branch
        %165 = sbr.rel (%p162) target = $region12
      $region11: #{tpu_custom_call.1} parent=5 // pred_region
        %s166 = ssub.s32 %s21, 1
        // Predicated region
        $region13: #{tpu_custom_call.1} parent=11 // pred_check
          %p167 = pneg %p42
        $region14: #{tpu_custom_call.1} parent=11 // pred_check_branch
          %169 = sbr.rel (%p167) target = $region16
        $region15: #{tpu_custom_call.1} parent=11 // pred_region
          _
        $region16: #{tpu_custom_call.1} parent=11 // pred_fallthru
          _
        // Predicated region
        $region17: #{tpu_custom_call.1} parent=11 // pred_check
          %p170 = pneg %p63
        $region18: #{tpu_custom_call.1} parent=11 // pred_check_branch
          %172 = sbr.rel (%p170) target = $region20
        $region19: #{tpu_custom_call.1} parent=11 // pred_region
          _
        $region20: #{tpu_custom_call.1} parent=11 // pred_fallthru
          _
        // Predicated region
        $region21: #{tpu_custom_call.1} parent=11 // pred_check
          %p173 = pneg %p84
        $region22: #{tpu_custom_call.1} parent=11 // pred_check_branch
          %175 = sbr.rel (%p173) target = $region24
        $region23: #{tpu_custom_call.1} parent=11 // pred_region
          %s177 = ssub.s32 1152, 1152
          %178 = vsyncadd [#allocation7], %s177
          %s179 = sshll.u32 [#allocation6], 4
          %s180 = int_to_ptr.vmem [resolvable:$true] %s179
          %185 = dma.hbm_to_vmem [thread:$0]  %s3, 1152, %s180, [#allocation7], 128, 128, 8
        $region24: #{tpu_custom_call.1} parent=11 // pred_fallthru
          _
        // Predicated region
        $region25: #{tpu_custom_call.1} parent=11 // pred_check
          %p186 = pneg %p105
        $region26: #{tpu_custom_call.1} parent=11 // pred_check_branch
          %188 = sbr.rel (%p186) target = $region28
        $region27: #{tpu_custom_call.1} parent=11 // pred_region
          _
        $region28: #{tpu_custom_call.1} parent=11 // pred_fallthru
          _
        // Predicated region
        $region29: #{tpu_custom_call.1} parent=11 // pred_check
          %p189 = pneg %p126
        $region30: #{tpu_custom_call.1} parent=11 // pred_check_branch
          %191 = sbr.rel (%p189) target = $region32
        $region31: #{tpu_custom_call.1} parent=11 // pred_region
          _
        $region32: #{tpu_custom_call.1} parent=11 // pred_fallthru
          _
      $region12: #{tpu_custom_call.1} parent=5 // pred_fallthru
        _
      %p192 = scmp.lt.s32.totalorder %s21, 2
      // Predicated region
      $region33: #{tpu_custom_call.1} parent=5 // pred_check
        %p193 = pneg %p192
      $region34: #{tpu_custom_call.1} parent=5 // pred_check_branch
        %195 = sbr.rel (%p193) target = $region36
      $region35: #{tpu_custom_call.1} parent=5 // pred_region
        _
      $region36: #{tpu_custom_call.1} parent=5 // pred_fallthru
        _
      %p196 = scmp.le.s32.totalorder 1, %s21
      %p197 = scmp.lt.s32.totalorder %s21, 3
      %p198 = pnand %p196, %p197
      %p199 = pneg %p198
      // Predicated region
      $region37: #{tpu_custom_call.1} parent=5 // pred_check
        _
      $region38: #{tpu_custom_call.1} parent=5 // pred_check_branch
        %201 = sbr.rel (%p198) target = $region40
      $region39: #{tpu_custom_call.1} parent=5 // pred_region
        %s202 = ssub.s32 %s21, 1
        // Predicated region
        $region41: #{tpu_custom_call.1} parent=39 // pred_check
          %p203 = pneg %p84
        $region42: #{tpu_custom_call.1} parent=39 // pred_check_branch
          %205 = sbr.rel (%p203) target = $region44
        $region43: #{tpu_custom_call.1} parent=39 // pred_region
          %206 = dma.done [#allocation7], 1152
        $region44: #{tpu_custom_call.1} parent=39 // pred_fallthru
          _
        %p207 = pneg %p42
        %p208 = pneg %p39
        %p209 = pneg %p63
        %p210 = pneg %p60
        %p211 = pneg %p84
        %p212 = pneg %p81
        %p213 = pneg %p105
        %p214 = pneg %p102
        %p215 = pneg %p126
        %p216 = pneg %p123
        %p217 = pneg %p152
        %p218 = pneg %p149
        %s219 = sand.u32 %s139, 1
        %s220 = scalar_lea.sflag [#allocation8], %s219
        %s221 = sand.u32 %s139, 1
        %s222 = smul.addr %s221, 8
        %s223 = scalar_lea.vmem [#allocation9], %s222
        %s224 = smul.u32 %s26, 8
        %s225 = sld [smem:[#allocation5 + %s224]]
        %s226 = smul.addr %s225, 16
        %s227 = scalar_lea.hbm %s6, %s226
        // Predicated region
        $region45: #{tpu_custom_call.1} parent=39 // pred_check
          _
        $region46: #{tpu_custom_call.1} parent=39 // pred_check_branch
          %229 = sbr.rel target = $region48
        $region47: #{tpu_custom_call.1} parent=39 // pred_region
          %230 = sst [smem:[#allocation12]] [#allocation11]
          %231 = sst [smem:[#allocation13]] [#allocation10]
        $region48: #{tpu_custom_call.1} parent=39 // pred_fallthru
          _
        %233 = shalt.err (0)
        %s235 = sshll.u32 [#allocation2], 4
        %s236 = int_to_ptr.vmem [resolvable:$true] %s235
        %238 = dma.hbm_to_vmem [thread:$0]  %s227, 16, %s236, [#allocation3]
        %s239 = sadd.s32 %s224, 1
        %s240 = sld [smem:[#allocation5 + %s239]]
        %s241 = smul.addr %s240, 16
        %s242 = scalar_lea.hbm %s6, %s241
        %s243 = scalar_lea.vmem [#allocation2], 1
        // Predicated region
        $region49: #{tpu_custom_call.1} parent=39 // pred_check
          _
        $region50: #{tpu_custom_call.1} parent=39 // pred_check_branch
          %245 = sbr.rel target = $region52
        $region51: #{tpu_custom_call.1} parent=39 // pred_region
          %246 = sst [smem:[#allocation12]] [#allocation15]
          %247 = sst [smem:[#allocation13]] [#allocation14]
        $region52: #{tpu_custom_call.1} parent=39 // pred_fallthru
          _
        %249 = shalt.err (0)
        %s251 = sshll.u32 %s243, 4
        %s252 = int_to_ptr.vmem [resolvable:$true] %s251
        %254 = dma.hbm_to_vmem [thread:$0]  %s242, 16, %s252, [#allocation3]
        %s255 = sadd.s32 %s224, 2
        %s256 = sld [smem:[#allocation5 + %s255]]
        %s257 = smul.addr %s256, 16
        %s258 = scalar_lea.hbm %s6, %s257
        %s259 = scalar_lea.vmem [#allocation2], 2
        // Predicated region
        $region53: #{tpu_custom_call.1} parent=39 // pred_check
          _
        $region54: #{tpu_custom_call.1} parent=39 // pred_check_branch
          %261 = sbr.rel target = $region56
        $region55: #{tpu_custom_call.1} parent=39 // pred_region
          %262 = sst [smem:[#allocation12]] [#allocation17]
          %263 = sst [smem:[#allocation13]] [#allocation16]
        $region56: #{tpu_custom_call.1} parent=39 // pred_fallthru
          _
        %265 = shalt.err (0)
        %s267 = sshll.u32 %s259, 4
        %s268 = int_to_ptr.vmem [resolvable:$true] %s267
        %270 = dma.hbm_to_vmem [thread:$0]  %s258, 16, %s268, [#allocation3]
        %s271 = sadd.s32 %s224, 3
        %s272 = sld [smem:[#allocation5 + %s271]]
        %s273 = smul.addr %s272, 16
        %s274 = scalar_lea.hbm %s6, %s273
        %s275 = scalar_lea.vmem [#allocation2], 3
        // Predicated region
        $region57: #{tpu_custom_call.1} parent=39 // pred_check
          _
        $region58: #{tpu_custom_call.1} parent=39 // pred_check_branch
          %277 = sbr.rel target = $region60
        $region59: #{tpu_custom_call.1} parent=39 // pred_region
          %278 = sst [smem:[#allocation12]] [#allocation19]
          %279 = sst [smem:[#allocation13]] [#allocation18]
        $region60: #{tpu_custom_call.1} parent=39 // pred_fallthru
          _
        %281 = shalt.err (0)
        %s283 = sshll.u32 %s275, 4
        %s284 = int_to_ptr.vmem [resolvable:$true] %s283
        %286 = dma.hbm_to_vmem [thread:$0]  %s274, 16, %s284, [#allocation3]
        %s287 = sadd.s32 %s224, 4
        %s288 = sld [smem:[#allocation5 + %s287]]
        %s289 = smul.addr %s288, 16
        %s290 = scalar_lea.hbm %s6, %s289
        %s291 = scalar_lea.vmem [#allocation2], 4
        // Predicated region
        $region61: #{tpu_custom_call.1} parent=39 // pred_check
          _
        $region62: #{tpu_custom_call.1} parent=39 // pred_check_branch
          %293 = sbr.rel target = $region64
        $region63: #{tpu_custom_call.1} parent=39 // pred_region
          %294 = sst [smem:[#allocation12]] [#allocation21]
          %295 = sst [smem:[#allocation13]] [#allocation20]
        $region64: #{tpu_custom_call.1} parent=39 // pred_fallthru
          _
        %297 = shalt.err (0)
        %s299 = sshll.u32 %s291, 4
        %s300 = int_to_ptr.vmem [resolvable:$true] %s299
        %302 = dma.hbm_to_vmem [thread:$0]  %s290, 16, %s300, [#allocation3]
        %s303 = sadd.s32 %s224, 5
        %s304 = sld [smem:[#allocation5 + %s303]]
        %s305 = smul.addr %s304, 16
        %s306 = scalar_lea.hbm %s6, %s305
        %s307 = scalar_lea.vmem [#allocation2], 5
        // Predicated region
        $region65: #{tpu_custom_call.1} parent=39 // pred_check
          _
        $region66: #{tpu_custom_call.1} parent=39 // pred_check_branch
          %309 = sbr.rel target = $region68
        $region67: #{tpu_custom_call.1} parent=39 // pred_region
          %310 = sst [smem:[#allocation12]] [#allocation23]
          %311 = sst [smem:[#allocation13]] [#allocation22]
        $region68: #{tpu_custom_call.1} parent=39 // pred_fallthru
          _
        %313 = shalt.err (0)
        %s315 = sshll.u32 %s307, 4
        %s316 = int_to_ptr.vmem [resolvable:$true] %s315
        %318 = dma.hbm_to_vmem [thread:$0]  %s306, 16, %s316, [#allocation3]
        %s319 = sadd.s32 %s224, 6
        %s320 = sld [smem:[#allocation5 + %s319]]
        %s321 = smul.addr %s320, 16
        %s322 = scalar_lea.hbm %s6, %s321
        %s323 = scalar_lea.vmem [#allocation2], 6
        // Predicated region
        $region69: #{tpu_custom_call.1} parent=39 // pred_check
          _
        $region70: #{tpu_custom_call.1} parent=39 // pred_check_branch
          %325 = sbr.rel target = $region72
        $region71: #{tpu_custom_call.1} parent=39 // pred_region
          %326 = sst [smem:[#allocation12]] [#allocation25]
          %327 = sst [smem:[#allocation13]] [#allocation24]
        $region72: #{tpu_custom_call.1} parent=39 // pred_fallthru
          _
        %329 = shalt.err (0)
        %s331 = sshll.u32 %s323, 4
        %s332 = int_to_ptr.vmem [resolvable:$true] %s331
        %334 = dma.hbm_to_vmem [thread:$0]  %s322, 16, %s332, [#allocation3]
        %s335 = sadd.s32 %s224, 7
        %s336 = sld [smem:[#allocation5 + %s335]]
        %s337 = smul.addr %s336, 16
        %s338 = scalar_lea.hbm %s6, %s337
        %s339 = scalar_lea.vmem [#allocation2], 7
        // Predicated region
        $region73: #{tpu_custom_call.1} parent=39 // pred_check
          _
        $region74: #{tpu_custom_call.1} parent=39 // pred_check_branch
          %341 = sbr.rel target = $region76
        $region75: #{tpu_custom_call.1} parent=39 // pred_region
          %342 = sst [smem:[#allocation12]] [#allocation27]
          %343 = sst [smem:[#allocation13]] [#allocation26]
        $region76: #{tpu_custom_call.1} parent=39 // pred_fallthru
          _
        %345 = shalt.err (0)
        %s347 = sshll.u32 %s339, 4
        %s348 = int_to_ptr.vmem [resolvable:$true] %s347
        %350 = dma.hbm_to_vmem [thread:$0]  %s338, 16, %s348, [#allocation3]
        %s351 = smul.u32 8, 1
        %s352 = sshll.u32 %s351, 4
        %353 = dma.done [#allocation3], %s352
        %s354 = scalar_lea.vmem %s1, %s26
        %v355 = vld [vmem:[%s354] sm:$0x1]
        %s356 = scalar_lea.vmem %s2, %s26
        %v357 = vld [vmem:[%s356] sm:$0x1]
        %v358 = vlaneseq
        %v359 = vshrl.u32 %v358, 7
        %v360 = vlaneseq
        %v361 = vand.u32 %v360, 127
        %vm362 = vcmp.eq.s32.totalorder %v359, %v361
        %v363 = vlaneseq
        %v364 = vshrl.u32 %v363, 7
        %v365 = vsub.s32 0, %v364
        %v366 = vrot.slane %v355, %v365
        %v367 = vsel %vm362, %v366, 0
        %vm368 = vcmask 64512
        %v369 = vsel %vm368, %v367, 0
        %v370 = vand.u32 %v369, 65535
        %v371 = vshrl.u32 %v369, 16
        %v372 = vcvt.s32.f32 %v370
        %v373 = vcvt.s32.f32 %v371
        %374 = vadd.xlane.f32.xlu0 %v372
        %v375 = vpop.xlane.xlu0 %374
        %376 = vadd.xlane.f32.xlu0 %v373
        %v377 = vpop.xlane.xlu0 %376
        %v378 = vcvt.f32.s32 %v375
        %v379 = vcvt.f32.s32 %v377
        %v380 = vshll.u32 %v379, 16
        %v381 = vadd.s32 %v380, %v378
        %v382 = vlaneseq
        %v383 = vshrl.u32 %v382, 7
        %v384 = vsub.s32 0, %v383
        %v385 = vrot.slane %v357, %v384
        %v386 = vsel %vm362, %v385, 0
        %v387 = vsel %vm368, %v386, 0
        %v388 = vand.u32 %v387, 65535
        %v389 = vshrl.u32 %v387, 16
        %v390 = vcvt.s32.f32 %v388
        %v391 = vcvt.s32.f32 %v389
        %392 = vadd.xlane.f32.xlu0 %v390
        %v393 = vpop.xlane.xlu0 %392
        %394 = vadd.xlane.f32.xlu0 %v391
        %v395 = vpop.xlane.xlu0 %394
        %v396 = vcvt.f32.s32 %v393
        %v397 = vcvt.f32.s32 %v395
        %v398 = vshll.u32 %v397, 16
        %v399 = vadd.s32 %v398, %v396
        %vm400 = vcmp.eq.s32.totalorder %v361, %v381
        %vm401 = vcmp.eq.s32.totalorder %v361, %v399
        %vm402 = vmor %vm400, %vm401
        %v403 = vsel %vm402, 1, 0
        %v404 = vcvt.s32.f32 %v403
        %v405 = vld [vmem:[#allocation6] sm:$0xff]
        %v406 = vld [vmem:[#allocation6 + $0x8] sm:$0xff]
        %v407 = vld [vmem:[#allocation6 + $0x10] sm:$0xff]
        %v408 = vld [vmem:[#allocation6 + $0x18] sm:$0xff]
        %v409 = vld [vmem:[#allocation6 + $0x20] sm:$0xff]
        %v410 = vld [vmem:[#allocation6 + $0x28] sm:$0xff]
        %v411 = vld [vmem:[#allocation6 + $0x30] sm:$0xff]
        %v412 = vld [vmem:[#allocation6 + $0x38] sm:$0xff]
        %v413 = vld [vmem:[#allocation6 + $0x40] sm:$0x3]
        %vm414 = vcmask 539648
        %v416 = vsel %vm414, %v404, 0
        %vm418 = vcmask 1041408
        %v420 = vsel %vm418, %v413, 0
        %422 = vmatprep.subr.mxu0 0.0
        %423 = vmatpush1.msra.mxu0 %v405
        %424 = vmatprep.subr.mxu0 0.0
        %425 = vmatpush1.msra.mxu0 %v406
        %426 = vmatprep.subr.mxu0 0.0
        %427 = vmatpush1.msra.mxu0 %v407
        %428 = vmatprep.subr.mxu0 0.0
        %429 = vmatpush1.msra.mxu0 %v408
        %430 = vmatprep.subr.mxu0 0.0
        %431 = vmatpush1.msra.mxu0 %v409
        %432 = vmatprep.subr.mxu0 0.0
        %433 = vmatpush1.msra.mxu0 %v410
        %434 = vmatprep.subr.mxu0 0.0
        %435 = vmatpush1.msra.mxu0 %v411
        %436 = vmatprep.subr.mxu0 0.0
        %437 = vmatpush1.msra.mxu0 %v412
        %438 = vmatprep.subr.mxu0 0.0
        %439 = vmatpush1.msra.mxu0 %v420
        %440 = vmatprep.subr.mxu0 0.0
        %441 = vmatpush1.msra.mxu0 0.0
        %442 = vmatprep.subr.mxu0 0.0
        %443 = vmatpush1.msra.mxu0 0.0
        %444 = vmatprep.subr.mxu0 0.0
        %445 = vmatpush1.msra.mxu0 0.0
        %446 = vmatprep.subr.mxu0 0.0
        %447 = vmatpush1.msra.mxu0 0.0
        %448 = vmatprep.subr.mxu0 0.0
        %449 = vmatpush1.msra.mxu0 0.0
        %450 = vmatprep.subr.mxu0 0.0
        %451 = vmatpush1.msra.mxu0 0.0
        %452 = vmatprep.subr.mxu0 0.0
        %453 = vmatpush1.msra.mxu0 0.0
        %454 = vmatprep.subr.mxu0 0.0
        %455 = vmatpush1.msra.mxu0 0.0
        %456 = vmatprep.subr.mxu0 0.0
        %457 = vmatpush1.msra.mxu0 0.0
        %458 = vmatprep.subr.mxu0 0.0
        %459 = vmatpush1.msra.mxu0 0.0
        %460 = vmatprep.subr.mxu0 0.0
        %461 = vmatpush1.msra.mxu0 0.0
        %462 = vmatprep.subr.mxu0 0.0
        %463 = vmatpush1.msra.mxu0 0.0
        %464 = vmatprep.subr.mxu0 0.0
        %465 = vmatpush1.msra.mxu0 0.0
        %466 = vmatprep.subr.mxu0 0.0
        %467 = vmatpush1.msra.mxu0 0.0
        %468 = vmatprep.subr.mxu0 0.0
        %469 = vmatpush1.msra.mxu0 0.0
        %470 = vmatprep.subr.mxu0 0.0
        %471 = vmatpush1.msra.mxu0 0.0
        %472 = vmatprep.subr.mxu0 0.0
        %473 = vmatpush1.msra.mxu0 0.0
        %474 = vmatprep.subr.mxu0 0.0
        %475 = vmatpush1.msra.mxu0 0.0
        %476 = vmatprep.subr.mxu0 0.0
        %477 = vmatpush1.msra.mxu0 0.0
        %478 = vmatprep.subr.mxu0 0.0
        %479 = vmatpush1.msra.mxu0 0.0
        %480 = vmatprep.subr.mxu0 0.0
        %481 = vmatpush1.msra.mxu0 0.0
        %482 = vmatprep.subr.mxu0 0.0
        %483 = vmatpush1.msra.mxu0 0.0
        %484 = vmatprep.subr.mxu0 0.0
        %485 = vmatpush1.msra.mxu0 0.0
        %486 = vmatprep.mubr.f32.mxu0 0.0
        %487 = vmatmul.mubr.f32.gmra.mrb[0].mxu0 %v416
        %v488 = vpop.f32.mrb[0].mxu0
        %v489 = vadd.f32 0.0, %v488
        %v490 = vpop.f32.mrb[0].mxu0
        %491 = vdwg.mxu0
        %v492 = vld [vmem:[#allocation2] sm:$0xff]
        %v493 = vadd.f32 %v492, %v489
        %494 = vadd.xlane.f32.xlu0 %v493
        %v495 = vpop.xlane.xlu0 %494
        %v496 = vrcp.pop 128.0
        %v497 = vmul.f32 %v495, %v496
        %v498 = vsub.f32 %v493, %v497
        %v499 = vmul.f32 %v498, %v498
        %500 = vadd.xlane.f32.xlu0 %v499
        %v501 = vpop.xlane.xlu0 %500
        %v502 = vmul.f32 %v501, %v496
        %v503 = vadd.f32 %v502, 1e-12
        %v504 = vrsqrt.pop %v503
        %v505 = vmul.f32 %v498, %v504
        %v506 = vld [vmem:[%s4] sm:$0x1]
        %v508 = vlaneseq
        %v509 = vshrl.u32 %v508, 7
        %v510 = vsub.s32 0, %v509
        %v511 = vrot.slane %v506, %v510
        %v513 = vmul.f32 %v505, %v511
        %v514 = vld [vmem:[%s5] sm:$0x1]
        %v516 = vlaneseq
        %v517 = vshrl.u32 %v516, 7
        %v518 = vsub.s32 0, %v517
        %v519 = vrot.slane %v514, %v518
        %v521 = vadd.f32 %v513, %v519
        %522 = vst [vmem:[%s223] sm:$0xff] %v521
        %s523 = sand.u32 %s139, 1
        %s524 = scalar_lea.sflag [#allocation8], %s523
        %s525 = sand.u32 %s139, 1
        %s526 = smul.addr %s525, 8
        %s527 = scalar_lea.vmem [#allocation9], %s526
        // Predicated region
        $region77: #{tpu_custom_call.1} parent=39 // pred_check
          %p528 = pneg %p149
        $region78: #{tpu_custom_call.1} parent=39 // pred_check_branch
          %530 = sbr.rel (%p528) target = $region80
        $region79: #{tpu_custom_call.1} parent=39 // pred_region
          %s532 = ssub.s32 128, 128
          %533 = vsyncadd %s524, %s532
          %s534 = smul.addr %s26, 128
          %s535 = scalar_lea.hbm %s7, %s534
          %s537 = sshll.u32 %s527, 4
          %s538 = int_to_ptr.vmem [resolvable:$true] %s537
          %540 = dma.vmem_to_hbm [thread:$0]  %s538, 128, %s535, %s524
        $region80: #{tpu_custom_call.1} parent=39 // pred_fallthru
          _
      $region40: #{tpu_custom_call.1} parent=5 // pred_fallthru
        _
      %p541 = scmp.le.s32.totalorder 2, %s21
      // Predicated region
      $region81: #{tpu_custom_call.1} parent=5 // pred_check
        %p542 = pneg %p541
      $region82: #{tpu_custom_call.1} parent=5 // pred_check_branch
        %544 = sbr.rel (%p542) target = $region84
      $region83: #{tpu_custom_call.1} parent=5 // pred_region
        %s545 = ssub.s32 %s21, 2
        // Predicated region
        $region85: #{tpu_custom_call.1} parent=83 // pred_check
          %p546 = pneg %p155
        $region86: #{tpu_custom_call.1} parent=83 // pred_check_branch
          %548 = sbr.rel (%p546) target = $region88
        $region87: #{tpu_custom_call.1} parent=83 // pred_region
          %s549 = sand.u32 %s140, 1
          %s550 = scalar_lea.sflag [#allocation8], %s549
          %s551 = sand.u32 %s140, 1
          %s552 = smul.addr %s551, 8
          %s553 = scalar_lea.vmem [#allocation9], %s552
          %554 = dma.done %s550, 128
        $region88: #{tpu_custom_call.1} parent=83 // pred_fallthru
          _
      $region84: #{tpu_custom_call.1} parent=5 // pred_fallthru
        _
    $region6: #{tpu_custom_call.1} parent=1 // loop_footer
      %s25 = sadd.s32 1, %s21
    $region7: #{tpu_custom_call.1} parent=1 // loop_footer_branch
      %20 = sbr.rel target = $region3
    $region8: #{tpu_custom_call.1} parent=1 // loop_exit
      _
    %555 = vsyncpa [#allocation7], 1
    %s556 = scalar_lea.sflag [#allocation7], 1
    %557 = vsyncpa %s556, 1
    %558 = vsyncpa [#allocation8], 1
    %s559 = scalar_lea.sflag [#allocation8], 1
    %560 = vsyncpa %s559, 1
  %561 = vsyncmov [#allocation3]
  %s562 = vpop.sfrf %561
  %p563 = scmp.eq.s32.totalorder %s562, 0
  %p564 = pneg %p563
  %566 = shalt.err (%p564)
  %s567 = scalar_lea.sflag [#allocation3], 1
  %568 = vsyncmov %s567
  %s569 = vpop.sfrf %568
  %p570 = scmp.eq.s32.totalorder %s569, 0
  %p571 = pneg %p570
  %573 = shalt.err (%p571)

</llo_original>
